<compile_context>
chip_gen: v7x
topology: tpu7x:2x2x1
jax: 0.10.0
libtpu: 0.0.40
codegen_flags: <defaults>
</compile_context>

<pallas_src>
import functools
import numpy as np

import jax
import jax.numpy as jnp
from jax.experimental import pallas as pl
from jax.experimental.pallas import tpu as pltpu


# ------------------------------------------------------------------
# Parameter construction (deterministic, mirrors HexagonalGCs.__init__)
# ------------------------------------------------------------------
def rotation_matrix(theta_deg):
    t = np.deg2rad(theta_deg)
    c, s = np.cos(t), np.sin(t)
    return np.array([[c, -s], [s, c]])


def make_ks(f=1.0, init_rot=0.0):
    # three hexagonal plane-wave vectors, 60 degrees apart, scaled by 2*pi*f
    rot_init = rotation_matrix(init_rot)
    rot_60 = rotation_matrix(60.0)
    k1 = rot_init @ np.array([1.0, 0.0])
    ks = np.stack(
        [np.linalg.matrix_power(rot_60, k) @ k1 for k in range(3)], axis=0
    )
    return (ks * f * 2.0 * np.pi).astype(np.float32)  # (3, 2)


def make_phases(ncells, f=1.0, seed=0):
    # Deterministic stand-in for Hexagon(radius=f*2/3).sample(ncells):
    # seeded RNG sampling inside the inscribed circle of the unit-cell hexagon.
    # TODO(synk): exact Hexagon rejection sampling is host-side init, not part
    # of the forward pass, so a deterministic in-hexagon sampler is used here.
    rng = np.random.default_rng(seed)
    radius = f * 2.0 / 3.0
    r_in = radius * np.sqrt(3.0) / 2.0
    ang = rng.uniform(0.0, 2.0 * np.pi, ncells)
    rad = r_in * np.sqrt(rng.uniform(0.0, 1.0, ncells))
    phases = np.stack([rad * np.cos(ang), rad * np.sin(ang)], axis=-1)
    return phases.astype(np.float32)  # (ncells, 2)


def _round_up(x, m):
    return ((x + m - 1) // m) * m


# ------------------------------------------------------------------
# Pallas kernel: (tile_n, 8) @ (8, tile_c) + affine (+ ReLU)
# ------------------------------------------------------------------
def _gc_forward_kernel(a_ref, b_ref, o_ref, *, rectify):
    # a_ref: (tile_n, 8)   per-sample [cos(rk0..2), sin(rk0..2), 0, 0]
    # b_ref: (8, tile_c)   per-cell   [cos(pk0..2); sin(pk0..2); 0; 0]
    # o_ref: (tile_n, tile_c) activity tile
    act = jnp.dot(a_ref[...], b_ref[...], preferred_element_type=jnp.float32)
    # sum_j cos((r - phase) @ k_j), then the original affine map
    act = (2.0 / 3.0) * (act / 3.0 + 0.5)
    if rectify:
        act = jnp.maximum(act, 0.0)
    o_ref[...] = act.astype(o_ref.dtype)


def hexagonal_gcs_forward(r, phases, ks, *, rectify=False,
                          tile_n=512, tile_c=512):
    """r: (N, 2) f32; phases: (ncells, 2); ks: (3, 2) -> activity (N, ncells)."""
    r = jnp.asarray(r, jnp.float32)
    phases = jnp.asarray(phases, jnp.float32)
    ks = jnp.asarray(ks, jnp.float32)

    N = r.shape[0]
    C = phases.shape[0]

    # ---- O(N + C) precompute in the wrapper (done once, tiny) -------------
    rk = jnp.dot(r, ks.T)        # (N, 3)
    pk = jnp.dot(phases, ks.T)   # (C, 3)
    # per-sample table A: (N, 8) = [cos(rk), sin(rk), 0, 0]  (K padded 6 -> 8)
    a = jnp.concatenate(
        [jnp.cos(rk), jnp.sin(rk), jnp.zeros((N, 2), jnp.float32)], axis=-1)
    # per-cell table B: (8, C) = [cos(pk); sin(pk); 0; 0]
    b = jnp.concatenate(
        [jnp.cos(pk), jnp.sin(pk), jnp.zeros((C, 2), jnp.float32)], axis=-1).T

    # ---- tile sizing: lane-dense output, no divisibility requirements -----
    tn = _round_up(max(8, min(tile_n, _round_up(N, 8))), 8)
    tc = _round_up(max(128, min(tile_c, _round_up(C, 128))), 128)
    n_pad = _round_up(N, tn)
    c_pad = _round_up(C, tc)
    a = jnp.pad(a, ((0, n_pad - N), (0, 0)))
    b = jnp.pad(b, ((0, 0), (0, c_pad - C)))

    grid = (n_pad // tn, c_pad // tc)
    kernel = functools.partial(_gc_forward_kernel, rectify=rectify)

    grid_spec = pltpu.PrefetchScalarGridSpec(
        num_scalar_prefetch=0,
        grid=grid,
        in_specs=[
            pl.BlockSpec((tn, 8), lambda i, j: (i, 0)),   # sample trig table
            pl.BlockSpec((8, tc), lambda i, j: (0, j)),   # cell trig table
        ],
        out_specs=pl.BlockSpec((tn, tc), lambda i, j: (i, j)),
    )

    out_padded = pl.pallas_call(
        kernel,
        out_shape=jax.ShapeDtypeStruct((n_pad, c_pad), jnp.float32),
        grid_spec=grid_spec,
        compiler_params=pltpu.CompilerParams(
            # no reduction axis -> both grid dims are independent; lets v7x
            # shard the grid across its two TensorCores.
            dimension_semantics=("parallel", "parallel"),
            # 512x512 f32 tiles (1 MiB/buffer, double-buffered) fit the default
            # scoped VMEM on every generation; raise this if tile_n/tile_c grow.
            vmem_limit_bytes=64 * 1024 * 1024,
        ),
    )(a, b)

    return out_padded[:N, :C]


# Pure-JAX reference (mirrors the torch forward exactly)
def _forward_ref(r, phases, ks, rectify=False):
    act = jnp.cos(jnp.einsum("ncd,kd->nck", r[:, None, :] - phases[None, :, :], ks))
    act = jnp.sum(act, axis=-1)
    act = 2.0 / 3.0 * (act / 3.0 + 0.5)
    return jnp.maximum(act, 0.0) if rectify else act


if __name__ == "__main__":
    f, init_rot = 1.0, 0.0
    ks = jnp.asarray(make_ks(f, init_rot))  # (3, 2)

    # --- small case matching the module defaults (ncells=3) ---------------
    ncells, N = 3, 16
    phases = jnp.asarray(make_phases(ncells, f, 0))  # (3, 2)
    key = jax.random.PRNGKey(0)
    r = jax.random.uniform(key, (N, 2), dtype=jnp.float32, minval=-1.0, maxval=1.0)

    out = jax.block_until_ready(hexagonal_gcs_forward(r, phases, ks, rectify=False))
    ref = _forward_ref(r, phases, ks, rectify=False)
    np.testing.assert_allclose(np.asarray(out), np.asarray(ref), rtol=2e-5, atol=2e-5)

    # --- rectified path + shapes that do NOT divide the tiles --------------
    ncells2, N2 = 130, 200
    phases2 = jnp.asarray(make_phases(ncells2, f, 1))
    r2 = jax.random.uniform(jax.random.PRNGKey(1), (N2, 2), dtype=jnp.float32,
                            minval=-1.0, maxval=1.0)
    out2 = jax.block_until_ready(hexagonal_gcs_forward(r2, phases2, ks, rectify=True))
    ref2 = _forward_ref(r2, phases2, ks, rectify=True)
    np.testing.assert_allclose(np.asarray(out2), np.asarray(ref2), rtol=2e-5, atol=2e-5)

    print("KERNEL_OK")
</pallas_src>

<mosaic_0001>
module attributes {stable_mosaic.version = 11 : i64} {
  func.func @_gc_forward_kernel(%arg0: i32, %arg1: i32, %arg2: memref<16x8xf32, #tpu.memory_space<vmem>>, %arg3: memref<8x128xf32, #tpu.memory_space<vmem>>, %arg4: memref<16x128xf32, #tpu.memory_space<vmem>>) attributes {dimension_semantics = [#tpu.dimension_semantics<parallel>, #tpu.dimension_semantics<parallel>], iteration_bounds = array<i64: 1, 1>, scalar_prefetch = 0 : i64, scratch_operands = 0 : i64, tpu.core_type = #tpu.core_type<tc>, window_params = [{transform_indices = @transform_0, window_bounds = array<i64: 16, 8>}, {transform_indices = @transform_1, window_bounds = array<i64: 8, 128>}, {transform_indices = @transform_2, window_bounds = array<i64: 16, 128>}]} {
    %c0 = arith.constant 0 : index
    %c0_0 = arith.constant 0 : index
    %0 = vector.load %arg2[%c0, %c0_0] : memref<16x8xf32, #tpu.memory_space<vmem>>, vector<16x8xf32>
    %c0_1 = arith.constant 0 : index
    %c0_2 = arith.constant 0 : index
    %1 = vector.load %arg3[%c0_1, %c0_2] : memref<8x128xf32, #tpu.memory_space<vmem>>, vector<8x128xf32>
    %cst = arith.constant dense<0.000000e+00> : vector<16x128xf32>
    %2 = tpu.matmul %0, %1, %cst {dimension_numbers = #tpu.dot_dimension_numbers<[1], [0], [0], [1], [0, 0, 1, 1], [], []>} : vector<16x8xf32>, vector<8x128xf32>, vector<16x128xf32> -> vector<16x128xf32>
    %cst_3 = arith.constant 3.000000e+00 : f32
    %3 = vector.broadcast %cst_3 : f32 to vector<16x128xf32>
    %4 = arith.divf %2, %3 : vector<16x128xf32>
    %cst_4 = arith.constant 5.000000e-01 : f32
    %5 = vector.broadcast %cst_4 : f32 to vector<16x128xf32>
    %6 = arith.addf %4, %5 : vector<16x128xf32>
    %cst_5 = arith.constant 0.666666686 : f32
    %7 = vector.broadcast %cst_5 : f32 to vector<16x128xf32>
    %8 = arith.mulf %7, %6 : vector<16x128xf32>
    %c0_6 = arith.constant 0 : index
    %c0_7 = arith.constant 0 : index
    %9 = vector.load %arg4[%c0_6, %c0_7] : memref<16x128xf32, #tpu.memory_space<vmem>>, vector<16x128xf32>
    tpu.vector_store %arg4[%c0_6, %c0_7], %8 {strides = array<i32>} : memref<16x128xf32, #tpu.memory_space<vmem>>, vector<16x128xf32>,
    return
  }
  func.func @transform_0(%arg0: i32, %arg1: i32) -> (i32, i32) {
    %c0_i32 = arith.constant 0 : i32
    %c0_i32_0 = arith.constant 0 : i32
    return %arg0, %c0_i32 : i32, i32
  }
  func.func @transform_1(%arg0: i32, %arg1: i32) -> (i32, i32) {
    %c0_i32 = arith.constant 0 : i32
    %c0_i32_0 = arith.constant 0 : i32
    return %c0_i32, %arg1 : i32, i32
  }
  func.func @transform_2(%arg0: i32, %arg1: i32) -> (i32, i32) {
    %c0_i32 = arith.constant 0 : i32
    return %arg0, %arg1 : i32, i32
  }
}

</mosaic_0001>

<llo_original>
// kernel: tpu_custom_call.1
$region0: #{tpu_custom_call.1}
  #allocation0 [shape = 'u32[]', space=smem, size = 0x4, offset = 0x4, fixed_abs, tag = 'smem constant byte address 0x4 - core index']
  #allocation1 [shape = 'u32[144,128]{1,0:T(1,128)}', space=vmem, size = 0x12000, scoped, tag = 'internal scratch']
  %s0 = inlined_call_operand.hbm [shape: f32[16,8], index: 0, kind: input, shape index: {}]
  %s1 = inlined_call_operand.hbm [shape: f32[8,128], index: 1, kind: input, shape index: {}]
  %s2 = inlined_call_operand.hbm [shape: f32[16,128], index: 2, kind: output, shape index: {}]
  %s3 = sld [smem:[#allocation0]]
  $region26: #{tpu_custom_call.1} parent=0
    _
  %s5 = ssub.s32 1, %s3
  %s6 = scalar_select 0, %s5, %s3
  $region1: #{tpu_custom_call.1} parent=0
    #allocation2 [shape = 'u8[8192]{0}', space=vmem, size = 0x2000, scoped, tag = 'input window, operand 0, single buffered']
    #allocation3 [shape = 's32[1]{0}', space=sflag, size = 0x4, scoped, tag = 'scoped memory for tpu_custom_call.1']
    #allocation4 [shape = 's32[1]{0}', space=sflag, size = 0x4, scoped, tag = 'scoped memory for tpu_custom_call.1']
    #allocation5 [shape = 'u8[4096]{0}', space=vmem, size = 0x1000, scoped, tag = 'input window, operand 1, single buffered']
    #allocation6 [shape = 's32[1]{0}', space=sflag, size = 0x4, scoped, tag = 'scoped memory for tpu_custom_call.1']
    #allocation7 [shape = 'u8[8192]{0}', space=vmem, size = 0x2000, scoped, tag = 'output window, operand 0, single buffered']
    %7 = vsyncpa [#allocation3], 0
    %8 = vsyncpa [#allocation6], 0
    %9 = vsyncpa [#allocation4], 0
    // Predicated region
    $region2: #{tpu_custom_call.1} parent=1 // pred_check
      _
    $region3: #{tpu_custom_call.1} parent=1 // pred_check_branch
      %11 = sbr.rel (0) target = $region5
    $region4: #{tpu_custom_call.1} parent=1 // pred_region
      %s13 = ssub.s32 256, 256
      %14 = vsyncadd [#allocation3], %s13
      %s15 = sshll.u32 [#allocation2], 4
      %s16 = int_to_ptr.vmem [resolvable:$true] %s15
      %21 = dma.hbm_to_vmem [thread:$0]  %s0, 256, %s16, [#allocation3], 128, 128, 8
    $region5: #{tpu_custom_call.1} parent=1 // pred_fallthru
      _
    // Predicated region
    $region6: #{tpu_custom_call.1} parent=1 // pred_check
      _
    $region7: #{tpu_custom_call.1} parent=1 // pred_check_branch
      %23 = sbr.rel (0) target = $region9
    $region8: #{tpu_custom_call.1} parent=1 // pred_region
      %s25 = ssub.s32 128, 128
      %26 = vsyncadd [#allocation6], %s25
      %s28 = sshll.u32 [#allocation5], 4
      %s29 = int_to_ptr.vmem [resolvable:$true] %s28
      %31 = dma.hbm_to_vmem [thread:$0]  %s1, 128, %s29, [#allocation6]
    $region9: #{tpu_custom_call.1} parent=1 // pred_fallthru
      _
    // Predicated region
    $region10: #{tpu_custom_call.1} parent=1 // pred_check
      _
    $region11: #{tpu_custom_call.1} parent=1 // pred_check_branch
      %33 = sbr.rel (0) target = $region13
    $region12: #{tpu_custom_call.1} parent=1 // pred_region
      %34 = dma.done [#allocation3], 256
    $region13: #{tpu_custom_call.1} parent=1 // pred_fallthru
      _
    // Predicated region
    $region14: #{tpu_custom_call.1} parent=1 // pred_check
      _
    $region15: #{tpu_custom_call.1} parent=1 // pred_check_branch
      %36 = sbr.rel (0) target = $region17
    $region16: #{tpu_custom_call.1} parent=1 // pred_region
      %37 = dma.done [#allocation6], 128
    $region17: #{tpu_custom_call.1} parent=1 // pred_fallthru
      _
    %v38 = vld [vmem:[#allocation2] sm:$0xff]
    %v39 = vld [vmem:[#allocation2 + $0x8] sm:$0xff]
    %v40 = vld [vmem:[#allocation5] sm:$0xff]
    %vm41 = vcmask 64512
    %v43 = vsel %vm41, %v38, 0
    %v46 = vsel %vm41, %v39, 0
    %48 = vmatprep.subr.mxu0 0.0
    %49 = vmatpush1.msra.mxu0 %v40
    %50 = vmatprep.subr.mxu0 0.0
    %51 = vmatpush1.msra.mxu0 0.0
    %52 = vmatprep.subr.mxu0 0.0
    %53 = vmatpush1.msra.mxu0 0.0
    %54 = vmatprep.subr.mxu0 0.0
    %55 = vmatpush1.msra.mxu0 0.0
    %56 = vmatprep.subr.mxu0 0.0
    %57 = vmatpush1.msra.mxu0 0.0
    %58 = vmatprep.subr.mxu0 0.0
    %59 = vmatpush1.msra.mxu0 0.0
    %60 = vmatprep.subr.mxu0 0.0
    %61 = vmatpush1.msra.mxu0 0.0
    %62 = vmatprep.subr.mxu0 0.0
    %63 = vmatpush1.msra.mxu0 0.0
    %64 = vmatprep.subr.mxu0 0.0
    %65 = vmatpush1.msra.mxu0 0.0
    %66 = vmatprep.subr.mxu0 0.0
    %67 = vmatpush1.msra.mxu0 0.0
    %68 = vmatprep.subr.mxu0 0.0
    %69 = vmatpush1.msra.mxu0 0.0
    %70 = vmatprep.subr.mxu0 0.0
    %71 = vmatpush1.msra.mxu0 0.0
    %72 = vmatprep.subr.mxu0 0.0
    %73 = vmatpush1.msra.mxu0 0.0
    %74 = vmatprep.subr.mxu0 0.0
    %75 = vmatpush1.msra.mxu0 0.0
    %76 = vmatprep.subr.mxu0 0.0
    %77 = vmatpush1.msra.mxu0 0.0
    %78 = vmatprep.subr.mxu0 0.0
    %79 = vmatpush1.msra.mxu0 0.0
    %80 = vmatprep.subr.mxu0 0.0
    %81 = vmatpush1.msra.mxu0 0.0
    %82 = vmatprep.subr.mxu0 0.0
    %83 = vmatpush1.msra.mxu0 0.0
    %84 = vmatprep.subr.mxu0 0.0
    %85 = vmatpush1.msra.mxu0 0.0
    %86 = vmatprep.subr.mxu0 0.0
    %87 = vmatpush1.msra.mxu0 0.0
    %88 = vmatprep.subr.mxu0 0.0
    %89 = vmatpush1.msra.mxu0 0.0
    %90 = vmatprep.subr.mxu0 0.0
    %91 = vmatpush1.msra.mxu0 0.0
    %92 = vmatprep.subr.mxu0 0.0
    %93 = vmatpush1.msra.mxu0 0.0
    %94 = vmatprep.subr.mxu0 0.0
    %95 = vmatpush1.msra.mxu0 0.0
    %96 = vmatprep.subr.mxu0 0.0
    %97 = vmatpush1.msra.mxu0 0.0
    %98 = vmatprep.subr.mxu0 0.0
    %99 = vmatpush1.msra.mxu0 0.0
    %100 = vmatprep.subr.mxu0 0.0
    %101 = vmatpush1.msra.mxu0 0.0
    %102 = vmatprep.subr.mxu0 0.0
    %103 = vmatpush1.msra.mxu0 0.0
    %104 = vmatprep.subr.mxu0 0.0
    %105 = vmatpush1.msra.mxu0 0.0
    %106 = vmatprep.subr.mxu0 0.0
    %107 = vmatpush1.msra.mxu0 0.0
    %108 = vmatprep.subr.mxu0 0.0
    %109 = vmatpush1.msra.mxu0 0.0
    %110 = vmatprep.subr.mxu0 0.0
    %111 = vmatpush1.msra.mxu0 0.0
    %112 = vmatprep.mubr.f32.mxu0 0.0
    %113 = vmatmul.mubr.f32.gmra.mrb[0].mxu0 %v43
    %v114 = vpop.f32.mrb[0].mxu0
    %v115 = vadd.f32 0.0, %v114
    %v116 = vpop.f32.mrb[0].mxu0
    %117 = vmatprep.mubr.f32.mxu0 0.0
    %118 = vmatmul.mubr.f32.gmra.mrb[0].mxu0 %v46
    %v119 = vpop.f32.mrb[0].mxu0
    %v120 = vadd.f32 0.0, %v119
    %v121 = vpop.f32.mrb[0].mxu0
    %122 = vdwg.mxu0
    %v123 = vrcp.pop 3.0
    %v124 = vmul.f32 %v115, %v123
    %v125 = vmul.f32 %v120, %v123
    %v126 = vadd.f32 %v124, 0.5
    %v127 = vadd.f32 %v125, 0.5
    %v128 = vmul.f32 %v126, 0.6666667
    %v129 = vmul.f32 %v127, 0.6666667
    %130 = vst [vmem:[#allocation7] sm:$0xff] %v128
    %131 = vst [vmem:[#allocation7 + $0x8] sm:$0xff] %v129
    // Predicated region
    $region18: #{tpu_custom_call.1} parent=1 // pred_check
      _
    $region19: #{tpu_custom_call.1} parent=1 // pred_check_branch
      %133 = sbr.rel (0) target = $region21
    $region20: #{tpu_custom_call.1} parent=1 // pred_region
      %s135 = ssub.s32 256, 256
      %136 = vsyncadd [#allocation4], %s135
      %s137 = sshll.u32 [#allocation7], 4
      %s138 = int_to_ptr.vmem [resolvable:$true] %s137
      %143 = dma.vmem_to_hbm [thread:$0]  %s138, 256, %s2, [#allocation4], 128, 128, 8
    $region21: #{tpu_custom_call.1} parent=1 // pred_fallthru
      _
    // Predicated region
    $region22: #{tpu_custom_call.1} parent=1 // pred_check
      _
    $region23: #{tpu_custom_call.1} parent=1 // pred_check_branch
      %145 = sbr.rel (0) target = $region25
    $region24: #{tpu_custom_call.1} parent=1 // pred_region
      %146 = dma.done [#allocation4], 256
    $region25: #{tpu_custom_call.1} parent=1 // pred_fallthru
      _
    %147 = vsyncpa [#allocation3], 1
    %148 = vsyncpa [#allocation6], 1
    %149 = vsyncpa [#allocation4], 1

</llo_original>
